<compile_context>
chip_gen: v5e
topology: v5e:2x2
jax: 0.10.0
libtpu: 0.0.40
codegen_flags: <defaults>
</compile_context>

<pallas_src>
import functools

import jax
import jax.numpy as jnp
from jax.experimental import pallas as pl
from jax.experimental.pallas import tpu as pltpu

GAMMA = 2.0  # baked into the kernel as an explicit square


def _focal_loss_kernel(x_ref, tgt_ref, w_ref, out_ref, num_ref, den_ref,
                       *, n_rows, tm, needs_row_mask):
    i = pl.program_id(0)

    @pl.when(i == 0)
    def _init():
        num_ref[...] = jnp.zeros_like(num_ref)
        den_ref[...] = jnp.zeros_like(den_ref)

    x = x_ref[...].astype(jnp.float32)      # (TM, C) logits (upcast in-register)
    tgt = tgt_ref[...]                      # (TM, 1) int32 class indices
    w = w_ref[...]                          # (1, C)  f32 class weights

    row_valid = None
    if needs_row_mask:
        # Rows past N in the (partial) last tile hold unspecified data; zero them
        # so the logsumexp stays finite, and drop them from num/den below.
        row = i * tm + jax.lax.broadcasted_iota(jnp.int32, (tm, 1), 0)
        row_valid = row < n_rows
        x = jnp.where(row_valid, x, 0.0)

    # Stable logsumexp along the class (lane) axis -- the only (TM, C)-wide
    # transcendental work that is actually required.
    m = jnp.max(x, axis=-1, keepdims=True)                              # (TM, 1)
    lse = jnp.log(jnp.sum(jnp.exp(x - m), axis=-1, keepdims=True)) + m  # (TM, 1)

    # One-hot select the target logit and the per-row class weight in one pass.
    cls = jax.lax.broadcasted_iota(jnp.int32, x.shape, 1)               # (TM, C)
    onehot = (cls == tgt).astype(jnp.float32)                           # (TM, C)
    x_t = jnp.sum(x * onehot, axis=-1, keepdims=True)                   # (TM, 1)
    w_t = jnp.sum(onehot * w, axis=-1, keepdims=True)                   # (TM, 1)

    # Focal term only on the picked values (N-sized work, gamma=2 -> square).
    logp_t = x_t - lse                                                  # (TM, 1)
    p_t = jnp.exp(logp_t)
    d = 1.0 - p_t
    focal_t = d * d * logp_t                                            # (TM, 1)

    if needs_row_mask:
        w_t = w_t * row_valid.astype(jnp.float32)

    num_ref[...] = num_ref[...] - jnp.sum(w_t * focal_t, keepdims=True)  # (1,1)
    den_ref[...] = den_ref[...] + jnp.sum(w_t, keepdims=True)            # (1,1)

    @pl.when(i == pl.num_programs(0) - 1)
    def _finalize():
        out_ref[...] = num_ref[...] / den_ref[...]


def focal_loss(logits, targets, weight, gamma=GAMMA, tm=None):
    """logits: (N, C) float, targets: (N,) int, weight: (C,) float -> scalar f32."""
    assert gamma == GAMMA, "gamma is baked into the kernel as an explicit square"
    # TODO(synk): general (non-2.0) gamma would need a scalar-prefetch arg + pow.
    N, C = logits.shape

    # VMEM-tile layout pads the lane dim to a multiple of 128; budget with that.
    C_lanes = ((C + 127) // 128) * 128

    if tm is None:
        # Row-tile size: big enough for pipelining, small enough that the
        # double-buffered input tiles + f32 intermediates stay well under the
        # scoped-VMEM default on every current chip.
        TM = 1024
        while TM > 8 and 2 * TM * C_lanes * 4 > (6 << 20):
            TM //= 2
        if N <= TM:
            TM = N              # single tile; full-dim block is always legal
    else:
        TM = tm

    grid = pl.cdiv(N, TM)
    needs_row_mask = (N % TM) != 0

    tgt2 = targets.astype(jnp.int32).reshape(N, 1)
    w2 = weight.astype(jnp.float32).reshape(1, C)

    kernel = functools.partial(_focal_loss_kernel, n_rows=N, tm=TM,
                               needs_row_mask=needs_row_mask)

    out = pl.pallas_call(
        kernel,
        out_shape=jax.ShapeDtypeStruct((1, 1), jnp.float32),
        grid_spec=pltpu.PrefetchScalarGridSpec(
            num_scalar_prefetch=0,
            grid=(grid,),
            in_specs=[
                pl.BlockSpec((TM, C), lambda i: (i, 0)),   # logits row tile (full class dim)
                pl.BlockSpec((TM, 1), lambda i: (i, 0)),   # targets row tile
                pl.BlockSpec((1, C), lambda i: (0, 0)),    # class weights (resident)
            ],
            out_specs=pl.BlockSpec((1, 1), lambda i: (0, 0)),  # resident scalar out
            scratch_shapes=[
                pltpu.VMEM((1, 1), jnp.float32),  # num accumulator
                pltpu.VMEM((1, 1), jnp.float32),  # den accumulator
            ],
        ),
        compiler_params=pltpu.CompilerParams(
            dimension_semantics=("arbitrary",),   # accumulator across the row axis
        ),
    )(logits, tgt2, w2)
    return out[0, 0]


def focal_loss_ref(logits, targets, weight, gamma=GAMMA):
    """Pure-JAX reference for correctness checking."""
    log_prob = jax.nn.log_softmax(logits.astype(jnp.float32), axis=-1)
    prob = jnp.exp(log_prob)
    focal = (1.0 - prob) ** gamma * log_prob
    picked = jnp.take_along_axis(focal, targets[:, None], axis=-1)[:, 0]
    w_t = weight[targets]
    return -jnp.sum(w_t * picked) / jnp.sum(w_t)


if __name__ == "__main__":
    key = jax.random.PRNGKey(0)
    k1, k2, k3 = jax.random.split(key, 3)

    # Small shape consistent with the module: batch of 8 samples, 16 classes.
    N, C = 8, 16
    logits = jax.random.normal(k1, (N, C), dtype=jnp.float32)
    targets = jax.random.randint(k2, (N,), 0, C, dtype=jnp.int32)
    weight = jax.random.uniform(k3, (C,), dtype=jnp.float32, minval=0.5, maxval=1.5)

    out = focal_loss(logits, targets, weight)
    jax.block_until_ready(out)
    ref = focal_loss_ref(logits, targets, weight)
    assert jnp.allclose(out, ref, rtol=1e-5, atol=1e-6), (out, ref)

    # Also exercise the multi-tile + ragged-tail path (forced small tile).
    k4, k5 = jax.random.split(k1)
    N2 = 100
    logits2 = jax.random.normal(k4, (N2, C), dtype=jnp.float32)
    targets2 = jax.random.randint(k5, (N2,), 0, C, dtype=jnp.int32)
    out2 = focal_loss(logits2, targets2, weight, tm=32)
    jax.block_until_ready(out2)
    ref2 = focal_loss_ref(logits2, targets2, weight)
    assert jnp.allclose(out2, ref2, rtol=1e-5, atol=1e-6), (out2, ref2)

    print("KERNEL_OK")
</pallas_src>

<mosaic_0001>
module attributes {stable_mosaic.version = 11 : i64} {
  func.func @_focal_loss_kernel(%arg0: i32, %arg1: memref<8x16xf32, #tpu.memory_space<vmem>>, %arg2: memref<8x1xi32, #tpu.memory_space<vmem>>, %arg3: memref<1x16xf32, #tpu.memory_space<vmem>>, %arg4: memref<1x1xf32, #tpu.memory_space<vmem>>, %arg5: memref<1x1xf32, #tpu.memory_space<vmem>>, %arg6: memref<1x1xf32, #tpu.memory_space<vmem>>) attributes {dimension_semantics = [#tpu.dimension_semantics<arbitrary>], iteration_bounds = array<i64: 1>, scalar_prefetch = 0 : i64, scratch_operands = 2 : i64, tpu.core_type = #tpu.core_type<tc>, window_params = [{transform_indices = @transform_0, window_bounds = array<i64: 8, 16>}, {transform_indices = @transform_1, window_bounds = array<i64: 8, 1>}, {pipeline_mode = #tpu.pipeline_mode<synchronous>, transform_indices = @transform_2, window_bounds = array<i64: 1, 16>}, {pipeline_mode = #tpu.pipeline_mode<synchronous>, transform_indices = @transform_3, window_bounds = array<i64: 1, 1>}]} {
    %c0_i32 = arith.constant 0 : i32
    %0 = arith.cmpi eq, %arg0, %c0_i32 : i32
    %1 = arith.extui %0 : i1 to i32
    %c0_i32_0 = arith.constant 0 : i32
    %2 = arith.cmpi ne, %1, %c0_i32_0 : i32
    scf.if %2 {
      %cst_22 = arith.constant 0.000000e+00 : f32
      %53 = vector.broadcast %cst_22 : f32 to vector<1x1xf32>
      %c0_23 = arith.constant 0 : index
      %c0_24 = arith.constant 0 : index
      %54 = vector.load %arg5[%c0_23, %c0_24] : memref<1x1xf32, #tpu.memory_space<vmem>>, vector<1x1xf32>
      tpu.vector_store %arg5[%c0_23, %c0_24], %53 {strides = array<i32>} : memref<1x1xf32, #tpu.memory_space<vmem>>, vector<1x1xf32>,
      %cst_25 = arith.constant 0.000000e+00 : f32
      %55 = vector.broadcast %cst_25 : f32 to vector<1x1xf32>
      %c0_26 = arith.constant 0 : index
      %c0_27 = arith.constant 0 : index
      %56 = vector.load %arg6[%c0_26, %c0_27] : memref<1x1xf32, #tpu.memory_space<vmem>>, vector<1x1xf32>
      tpu.vector_store %arg6[%c0_26, %c0_27], %55 {strides = array<i32>} : memref<1x1xf32, #tpu.memory_space<vmem>>, vector<1x1xf32>,
    } else {
    }
    %c0 = arith.constant 0 : index
    %c0_1 = arith.constant 0 : index
    %3 = vector.load %arg1[%c0, %c0_1] : memref<8x16xf32, #tpu.memory_space<vmem>>, vector<8x16xf32>
    %c0_2 = arith.constant 0 : index
    %c0_3 = arith.constant 0 : index
    %4 = vector.load %arg2[%c0_2, %c0_3] : memref<8x1xi32, #tpu.memory_space<vmem>>, vector<8x1xi32>
    %c0_4 = arith.constant 0 : index
    %c0_5 = arith.constant 0 : index
    %5 = vector.load %arg3[%c0_4, %c0_5] : memref<1x16xf32, #tpu.memory_space<vmem>>, vector<1x16xf32>
    %cst = arith.constant dense<0xFF800000> : vector<8xf32>
    %6 = vector.multi_reduction <maximumf>, %3, %cst [1] : vector<8x16xf32> to vector<8xf32>
    %7 = vector.shape_cast %6 : vector<8xf32> to vector<8x1xf32>
    %8 = vector.broadcast %7 : vector<8x1xf32> to vector<8x16xf32>
    %9 = arith.subf %3, %8 : vector<8x16xf32>
    %10 = math.exp %9 : vector<8x16xf32>
    %cst_6 = arith.constant dense<0.000000e+00> : vector<8xf32>
    %11 = vector.multi_reduction <add>, %10, %cst_6 [1] : vector<8x16xf32> to vector<8xf32>
    %12 = vector.shape_cast %11 : vector<8xf32> to vector<8x1xf32>
    %13 = math.log %12 : vector<8x1xf32>
    %14 = arith.addf %13, %7 : vector<8x1xf32>
    %15 = tpu.iota {dimensions = array<i32: 1>} : vector<8x16xi32>
    %16 = vector.broadcast %4 : vector<8x1xi32> to vector<8x16xi32>
    %17 = arith.cmpi eq, %15, %16 : vector<8x16xi32>
    %18 = arith.extui %17 : vector<8x16xi1> to vector<8x16xi32>
    %19 = arith.sitofp %18 : vector<8x16xi32> to vector<8x16xf32>
    %20 = arith.mulf %3, %19 : vector<8x16xf32>
    %cst_7 = arith.constant dense<0.000000e+00> : vector<8xf32>
    %21 = vector.multi_reduction <add>, %20, %cst_7 [1] : vector<8x16xf32> to vector<8xf32>
    %22 = vector.shape_cast %21 : vector<8xf32> to vector<8x1xf32>
    %23 = vector.broadcast %5 : vector<1x16xf32> to vector<8x16xf32>
    %24 = arith.mulf %19, %23 : vector<8x16xf32>
    %cst_8 = arith.constant dense<0.000000e+00> : vector<8xf32>
    %25 = vector.multi_reduction <add>, %24, %cst_8 [1] : vector<8x16xf32> to vector<8xf32>
    %26 = vector.shape_cast %25 : vector<8xf32> to vector<8x1xf32>
    %27 = arith.subf %22, %14 : vector<8x1xf32>
    %28 = math.exp %27 : vector<8x1xf32>
    %cst_9 = arith.constant 1.000000e+00 : f32
    %29 = vector.broadcast %cst_9 : f32 to vector<8x1xf32>
    %30 = arith.subf %29, %28 : vector<8x1xf32>
    %31 = arith.mulf %30, %30 : vector<8x1xf32>
    %32 = arith.mulf %31, %27 : vector<8x1xf32>
    %c0_10 = arith.constant 0 : index
    %c0_11 = arith.constant 0 : index
    %33 = vector.load %arg5[%c0_10, %c0_11] : memref<1x1xf32, #tpu.memory_space<vmem>>, vector<1x1xf32>
    %34 = arith.mulf %26, %32 : vector<8x1xf32>
    %35 = vector.shape_cast %34 : vector<8x1xf32> to vector<1x8x1xf32>
    %cst_12 = arith.constant dense<0.000000e+00> : vector<1xf32>
    %36 = vector.multi_reduction <add>, %35, %cst_12 [1, 2] : vector<1x8x1xf32> to vector<1xf32>
    %37 = vector.shape_cast %36 : vector<1xf32> to vector<1x1x1xf32>
    %38 = vector.extract %37[0, 0, 0] : f32 from vector<1x1x1xf32>
    %39 = vector.broadcast %38 : f32 to vector<1x1xf32>
    %40 = arith.subf %33, %39 : vector<1x1xf32>
    %c0_13 = arith.constant 0 : index
    %c0_14 = arith.constant 0 : index
    %41 = vector.load %arg5[%c0_13, %c0_14] : memref<1x1xf32, #tpu.memory_space<vmem>>, vector<1x1xf32>
    tpu.vector_store %arg5[%c0_13, %c0_14], %40 {strides = array<i32>} : memref<1x1xf32, #tpu.memory_space<vmem>>, vector<1x1xf32>,
    %c0_15 = arith.constant 0 : index
    %c0_16 = arith.constant 0 : index
    %42 = vector.load %arg6[%c0_15, %c0_16] : memref<1x1xf32, #tpu.memory_space<vmem>>, vector<1x1xf32>
    %43 = vector.shape_cast %26 : vector<8x1xf32> to vector<1x8x1xf32>
    %cst_17 = arith.constant dense<0.000000e+00> : vector<1xf32>
    %44 = vector.multi_reduction <add>, %43, %cst_17 [1, 2] : vector<1x8x1xf32> to vector<1xf32>
    %45 = vector.shape_cast %44 : vector<1xf32> to vector<1x1x1xf32>
    %46 = vector.extract %45[0, 0, 0] : f32 from vector<1x1x1xf32>
    %47 = vector.broadcast %46 : f32 to vector<1x1xf32>
    %48 = arith.addf %42, %47 : vector<1x1xf32>
    %c0_18 = arith.constant 0 : index
    %c0_19 = arith.constant 0 : index
    %49 = vector.load %arg6[%c0_18, %c0_19] : memref<1x1xf32, #tpu.memory_space<vmem>>, vector<1x1xf32>
    tpu.vector_store %arg6[%c0_18, %c0_19], %48 {strides = array<i32>} : memref<1x1xf32, #tpu.memory_space<vmem>>, vector<1x1xf32>,
    %c0_i32_20 = arith.constant 0 : i32
    %50 = arith.cmpi eq, %arg0, %c0_i32_20 : i32
    %51 = arith.extui %50 : i1 to i32
    %c0_i32_21 = arith.constant 0 : i32
    %52 = arith.cmpi ne, %51, %c0_i32_21 : i32
    scf.if %52 {
      %c0_22 = arith.constant 0 : index
      %c0_23 = arith.constant 0 : index
      %53 = vector.load %arg5[%c0_22, %c0_23] : memref<1x1xf32, #tpu.memory_space<vmem>>, vector<1x1xf32>
      %c0_24 = arith.constant 0 : index
      %c0_25 = arith.constant 0 : index
      %54 = vector.load %arg6[%c0_24, %c0_25] : memref<1x1xf32, #tpu.memory_space<vmem>>, vector<1x1xf32>
      %55 = arith.divf %53, %54 : vector<1x1xf32>
      %c0_26 = arith.constant 0 : index
      %c0_27 = arith.constant 0 : index
      %56 = vector.load %arg4[%c0_26, %c0_27] : memref<1x1xf32, #tpu.memory_space<vmem>>, vector<1x1xf32>
      tpu.vector_store %arg4[%c0_26, %c0_27], %55 {strides = array<i32>} : memref<1x1xf32, #tpu.memory_space<vmem>>, vector<1x1xf32>,
    } else {
    }
    return
  }
  func.func @transform_0(%arg0: i32) -> (i32, i32) {
    %c0_i32 = arith.constant 0 : i32
    %c0_i32_0 = arith.constant 0 : i32
    return %arg0, %c0_i32 : i32, i32
  }
  func.func @transform_1(%arg0: i32) -> (i32, i32) {
    %c0_i32 = arith.constant 0 : i32
    %c0_i32_0 = arith.constant 0 : i32
    return %arg0, %c0_i32 : i32, i32
  }
  func.func @transform_2(%arg0: i32) -> (i32, i32) {
    %c0_i32 = arith.constant 0 : i32
    %c0_i32_0 = arith.constant 0 : i32
    %c0_i32_1 = arith.constant 0 : i32
    return %c0_i32, %c0_i32_0 : i32, i32
  }
  func.func @transform_3(%arg0: i32) -> (i32, i32) {
    %c0_i32 = arith.constant 0 : i32
    %c0_i32_0 = arith.constant 0 : i32
    %c0_i32_1 = arith.constant 0 : i32
    return %c0_i32, %c0_i32_0 : i32, i32
  }
}

</mosaic_0001>

<llo_original>
// kernel: tpu_custom_call.1
$region0: #{tpu_custom_call.1}
  #allocation0 [shape = 'u32[]', space=smem, size = 0x4, offset = 0x4, fixed_abs, tag = 'smem constant byte address 0x4 - core index']
  #allocation1 [shape = 'u32[72,128]{1,0:T(1,128)}', space=vmem, size = 0x9000, scoped, tag = 'internal scratch']
  #allocation2 [shape = 'f32[1,1]{1,0:T(1,128)}', space=vmem, size = 0x200, scoped, tag = 'scratch operand']
  #allocation3 [shape = 'f32[1,1]{1,0:T(1,128)}', space=vmem, size = 0x200, scoped, tag = 'scratch operand']
  %s0 = inlined_call_operand.vmem [shape: f32[8,16], index: 0, kind: input, shape index: {}]
  %s1 = inlined_call_operand.vmem [shape: s32[8,1], index: 1, kind: input, shape index: {}]
  %s2 = inlined_call_operand.vmem [shape: f32[1,16], index: 2, kind: input, shape index: {}]
  %s3 = inlined_call_operand.hbm [shape: f32[1,1], index: 3, kind: output, shape index: {}]
  %s4 = sld [smem:[#allocation0]]
  $region30: #{tpu_custom_call.1} parent=0
    _
  %s6 = ssub.s32 1, %s4
  %s7 = scalar_select 0, %s6, %s4
  $region1: #{tpu_custom_call.1} parent=0
    #allocation4 [shape = 'u8[512]{0}', space=vmem, size = 0x400, scoped, tag = 'output window, operand 0, single buffered']
    #allocation5 [shape = 's32[1]{0}', space=sflag, size = 0x4, scoped, tag = 'scoped memory for tpu_custom_call.1']
    %8 = vsyncpa [#allocation5], 0
    // Predicated region
    $region2: #{tpu_custom_call.1} parent=1 // pred_check
      _
    $region3: #{tpu_custom_call.1} parent=1 // pred_check_branch
      %10 = sbr.rel (0) target = $region5
    $region4: #{tpu_custom_call.1} parent=1 // pred_region
      _
    $region5: #{tpu_custom_call.1} parent=1 // pred_fallthru
      _
    // Predicated region
    $region6: #{tpu_custom_call.1} parent=1 // pred_check
      _
    $region7: #{tpu_custom_call.1} parent=1 // pred_check_branch
      %12 = sbr.rel (0) target = $region9
    $region8: #{tpu_custom_call.1} parent=1 // pred_region
      _
    $region9: #{tpu_custom_call.1} parent=1 // pred_fallthru
      _
    // Predicated region
    $region10: #{tpu_custom_call.1} parent=1 // pred_check
      _
    $region11: #{tpu_custom_call.1} parent=1 // pred_check_branch
      %14 = sbr.rel (0) target = $region13
    $region12: #{tpu_custom_call.1} parent=1 // pred_region
      _
    $region13: #{tpu_custom_call.1} parent=1 // pred_fallthru
      _
    %p15 = scmp.eq.s32.totalorder 0, 0
    // Predicated region
    $region14: #{tpu_custom_call.1} parent=1 // pred_check
      %p16 = pneg %p15
    $region15: #{tpu_custom_call.1} parent=1 // pred_check_branch
      %18 = sbr.rel (%p16) target = $region17
    $region16: #{tpu_custom_call.1} parent=1 // pred_region
      %vm19 = vcmask 0
      %20 = vst.msk [vmem:[#allocation2] sm:$0x1] %vm19, 0.0
      %21 = vst.msk [vmem:[#allocation3] sm:$0x1] %vm19, 0.0
    $region17: #{tpu_custom_call.1} parent=1 // pred_fallthru
      _
    %v22 = vld [vmem:[%s0] sm:$0xff]
    %v23 = vld [vmem:[%s1] sm:$0xff]
    %v24 = vld [vmem:[%s2] sm:$0x1]
    %vm25 = vcmask 130048
    %v26 = vsel %vm25, %v22, -inf
    %27 = vmax.xlane.f32.xlu0 %v26
    %v28 = vpop.xlane.xlu0 %27
    %v29 = vsub.f32 %v22, %v28
    %v30 = vmul.f32 %v29, 1.442695
    %v31 = vpow.pop %v30
    %v32 = vsel %vm25, %v31, 0.0
    %33 = vadd.xlane.f32.xlu0 %v32
    %v34 = vpop.xlane.xlu0 %33
    %v35 = vlog2.pop %v34
    %v36 = vmul.f32 %v35, 0.6931472
    %v37 = vadd.f32 %v36, %v28
    %v38 = vlaneseq
    %v39 = vand.u32 %v38, 127
    %40 = vset.pattern.permute.xlu0 0
    %41 = vperm.xlu0 %40, %v23
    %v42 = vpop.permute.xlu0 %41
    %vm43 = vcmp.eq.s32.totalorder %v39, %v42
    %v44 = vsel %vm43, 1, 0
    %v45 = vcvt.s32.f32 %v44
    %v46 = vmul.f32 %v22, %v45
    %v47 = vsel %vm25, %v46, 0.0
    %48 = vadd.xlane.f32.xlu0 %v47
    %v49 = vpop.xlane.xlu0 %48
    %v51 = vperm.slane %v24, 0
    %v53 = vmul.f32 %v45, %v51
    %v54 = vsel %vm25, %v53, 0.0
    %55 = vadd.xlane.f32.xlu0 %v54
    %v56 = vpop.xlane.xlu0 %55
    %v57 = vsub.f32 %v49, %v37
    %v58 = vmul.f32 %v57, 1.442695
    %v59 = vpow.pop %v58
    %v60 = vsub.f32 1.0, %v59
    %v61 = vmul.f32 %v60, %v60
    %v62 = vmul.f32 %v61, %v57
    %v63 = vld [vmem:[#allocation2] sm:$0x1]
    %v64 = vmul.f32 %v56, %v62
    %vm65 = vcmask 7168
    %v66 = vsel %vm65, %v64, 0.0
    %67 = vadd.xlane.f32.xlu0 %v66
    %v68 = vpop.xlane.xlu0 %67
    %v69 = vrot.slane %v68, 4
    %v70 = vadd.f32 %v68, %v69
    %v71 = vrot.slane %v70, 2
    %v72 = vadd.f32 %v70, %v71
    %v73 = vrot.slane %v72, 1
    %v74 = vadd.f32 %v72, %v73
    %s75 = vtos %v74
    %v76 = vstv %s75
    %v77 = vsub.f32 %v63, %v76
    %vm78 = vcmask 0
    %79 = vst.msk [vmem:[#allocation2] sm:$0x1] %vm78, %v77
    %v80 = vld [vmem:[#allocation3] sm:$0x1]
    %v81 = vsel %vm65, %v56, 0.0
    %82 = vadd.xlane.f32.xlu0 %v81
    %v83 = vpop.xlane.xlu0 %82
    %v84 = vrot.slane %v83, 4
    %v85 = vadd.f32 %v83, %v84
    %v86 = vrot.slane %v85, 2
    %v87 = vadd.f32 %v85, %v86
    %v88 = vrot.slane %v87, 1
    %v89 = vadd.f32 %v87, %v88
    %s90 = vtos %v89
    %v91 = vstv %s90
    %v92 = vadd.f32 %v80, %v91
    %93 = vst.msk [vmem:[#allocation3] sm:$0x1] %vm78, %v92
    // Predicated region
    $region18: #{tpu_custom_call.1} parent=1 // pred_check
      %p94 = pneg %p15
    $region19: #{tpu_custom_call.1} parent=1 // pred_check_branch
      %96 = sbr.rel (%p94) target = $region21
    $region20: #{tpu_custom_call.1} parent=1 // pred_region
      %v97 = vld [vmem:[#allocation2] sm:$0x1]
      %v98 = vld [vmem:[#allocation3] sm:$0x1]
      %v99 = vrcp.pop %v98
      %v100 = vmul.f32 %v98, %v99
      %v101 = vsub.f32 1.0, %v100
      %v102 = vmul.f32 %v99, %v101
      %v103 = vadd.f32 %v99, %v102
      %vm104 = vweird.f32 %v98
      %vm105 = vweird.f32 %v99
      %vm106 = vmor %vm104, %vm105
      %v107 = vsel %vm106, %v99, %v103
      %v108 = vand.u32 2147483647, %v98
      %vm109 = vcmp.eq.f32.partialorder %v108, 8.507059e+37
      %v110 = vand.u32 %v98, 2147483648
      %v111 = vor.u32 1.1754944e-38, %v110
      %v112 = vsel %vm109, %v111, %v107
      %v113 = vmul.f32 %v97, %v112
      %114 = vst.msk [vmem:[#allocation4] sm:$0x1] %vm78, %v113
    $region21: #{tpu_custom_call.1} parent=1 // pred_fallthru
      _
    // Predicated region
    $region22: #{tpu_custom_call.1} parent=1 // pred_check
      _
    $region23: #{tpu_custom_call.1} parent=1 // pred_check_branch
      %116 = sbr.rel (0) target = $region25
    $region24: #{tpu_custom_call.1} parent=1 // pred_region
      %118 = vsyncadd [#allocation5], 0
      %s120 = sshll.u32 [#allocation4], 4
      %s121 = int_to_ptr.vmem [resolvable:$true] %s120
      %s122 = sshll.u32 %s3, 4
      %s123 = int_to_ptr.hbm [resolvable:$true] %s122
      %125 = dma.vmem_to_hbm [thread:$0]  %s121, 16, %s123, [#allocation5]
    $region25: #{tpu_custom_call.1} parent=1 // pred_fallthru
      _
    // Predicated region
    $region26: #{tpu_custom_call.1} parent=1 // pred_check
      _
    $region27: #{tpu_custom_call.1} parent=1 // pred_check_branch
      %127 = sbr.rel (0) target = $region29
    $region28: #{tpu_custom_call.1} parent=1 // pred_region
      %129 = dma.done [#allocation5], 16
    $region29: #{tpu_custom_call.1} parent=1 // pred_fallthru
      _
    %130 = vsyncpa [#allocation5], 1

</llo_original>
